<compile_context>
chip_gen: v7x
topology: tpu7x:2x2x1
jax: 0.10.0
libtpu: 0.0.40
codegen_flags: <defaults>
</compile_context>

<pallas_src>
import jax
import jax.numpy as jnp
from jax.experimental import pallas as pl
from jax.experimental.pallas import tpu as pltpu

M = 8
HIDDEN = 200          # logical hidden size (PyTorch module)
H_PAD = 256           # padded hidden size (full MXU / lane tiles)
NUM_IN = M            # 8
NUM_OUT = 2 * M       # 16
MAX_TILE_B = 128      # max batch rows per grid step


def mlp_kernel(x_ref, w1_ref, w2_ref, w3_ref, b_ref, o_ref):
    # x_ref : (tile_b, 8)   bf16
    # w1_ref: (8, 256)      bf16   (resident)
    # w2_ref: (256, 256)    bf16   (resident)
    # w3_ref: (256, 16)     bf16   (resident)
    # b_ref : (8, 256)      f32    row0 = b1, row1 = b2, row2[:16] = b3
    # o_ref : (tile_b, 16)  f32
    x = x_ref[...]
    b_all = b_ref[...]
    b1 = b_all[0:1, :]
    b2 = b_all[1:2, :]
    b3 = b_all[2:3, :NUM_OUT]

    h1 = jnp.dot(x, w1_ref[...], preferred_element_type=jnp.float32) + b1
    h1 = jnp.maximum(h1, 0.0).astype(jnp.bfloat16)

    h2 = jnp.dot(h1, w2_ref[...], preferred_element_type=jnp.float32) + b2
    h2 = jnp.maximum(h2, 0.0).astype(jnp.bfloat16)

    out = jnp.dot(h2, w3_ref[...], preferred_element_type=jnp.float32) + b3
    o_ref[...] = out.astype(o_ref.dtype)


def _round_up(x, m):
    return ((x + m - 1) // m) * m


@jax.jit
def net_forward_batch(xb, packed):
    """xb: (B, 8) float32 -> (B, 16) float32."""
    w1p, w2p, w3p, bias = packed
    B = xb.shape[0]
    # Adaptive batch tile: small forward (B=1) uses an 8-row tile, large
    # batches use 128-row tiles (sublane-aligned either way).
    tile_b = min(MAX_TILE_B, _round_up(B, 8))
    B_pad = _round_up(B, tile_b)
    xb_p = jnp.zeros((B_pad, NUM_IN), jnp.bfloat16).at[:B].set(
        xb.astype(jnp.bfloat16))

    out = pl.pallas_call(
        mlp_kernel,
        out_shape=jax.ShapeDtypeStruct((B_pad, NUM_OUT), jnp.float32),
        grid_spec=pltpu.PrefetchScalarGridSpec(
            num_scalar_prefetch=0,
            grid=(B_pad // tile_b,),
            in_specs=[
                pl.BlockSpec((tile_b, NUM_IN), lambda i: (i, 0)),   # x: per-tile
                pl.BlockSpec((NUM_IN, H_PAD), lambda i: (0, 0)),    # w1: resident
                pl.BlockSpec((H_PAD, H_PAD), lambda i: (0, 0)),     # w2: resident
                pl.BlockSpec((H_PAD, NUM_OUT), lambda i: (0, 0)),   # w3: resident
                pl.BlockSpec((8, H_PAD), lambda i: (0, 0)),         # biases: resident
            ],
            out_specs=pl.BlockSpec((tile_b, NUM_OUT), lambda i: (i, 0)),
        ),
        compiler_params=pltpu.CompilerParams(
            dimension_semantics=("parallel",),   # shard batch tiles across TCs
        ),
    )(xb_p, w1p, w2p, w3p, bias)
    return out[:B]


def net_forward(x, packed):
    """Module-equivalent forward: x (1, 8) -> (M, 2), matching
    Net.forward(x).squeeze().view(M, 2)."""
    out = net_forward_batch(x, packed)          # (1, 16)
    return out[0].reshape(M, 2)


def init_params(key):
    """PyTorch-style Linear init U(-1/sqrt(fan_in), 1/sqrt(fan_in)).
    Weights returned transposed to (in, out); biases as 1-D vectors."""
    ks = jax.random.split(key, 6)

    def linear(kw, kb, fan_in, fan_out):
        bound = 1.0 / jnp.sqrt(float(fan_in))
        w = jax.random.uniform(kw, (fan_in, fan_out), jnp.float32, -bound, bound)
        b = jax.random.uniform(kb, (fan_out,), jnp.float32, -bound, bound)
        return w, b

    w1, b1 = linear(ks[0], ks[1], NUM_IN, HIDDEN)
    w2, b2 = linear(ks[2], ks[3], HIDDEN, HIDDEN)
    w3, b3 = linear(ks[4], ks[5], HIDDEN, NUM_OUT)
    return w1, b1, w2, b2, w3, b3


def prepare_params(w1, b1, w2, b2, w3, b3):
    """Zero-pad hidden 200->256, cast weights to bf16, pack biases into one
    (8, 256) f32 slab. Padding is exact: padded weights/biases are zero."""
    w1p = jnp.zeros((NUM_IN, H_PAD), jnp.float32).at[:, :HIDDEN].set(w1)
    w2p = jnp.zeros((H_PAD, H_PAD), jnp.float32).at[:HIDDEN, :HIDDEN].set(w2)
    w3p = jnp.zeros((H_PAD, NUM_OUT), jnp.float32).at[:HIDDEN, :].set(w3)
    bias = jnp.zeros((8, H_PAD), jnp.float32)
    bias = bias.at[0, :HIDDEN].set(b1)
    bias = bias.at[1, :HIDDEN].set(b2)
    bias = bias.at[2, :NUM_OUT].set(b3)
    return (w1p.astype(jnp.bfloat16),
            w2p.astype(jnp.bfloat16),
            w3p.astype(jnp.bfloat16),
            bias)


def reference_forward(xb, w1p, w2p, w3p, bias):
    """Plain-JAX reference mirroring the kernel's bf16 numerics."""
    b1 = bias[0:1, :]
    b2 = bias[1:2, :]
    b3 = bias[2:3, :NUM_OUT]
    xb16 = xb.astype(jnp.bfloat16)
    h1 = jnp.maximum(
        jnp.dot(xb16, w1p, preferred_element_type=jnp.float32) + b1, 0.0
    ).astype(jnp.bfloat16)
    h2 = jnp.maximum(
        jnp.dot(h1, w2p, preferred_element_type=jnp.float32) + b2, 0.0
    ).astype(jnp.bfloat16)
    return jnp.dot(h2, w3p, preferred_element_type=jnp.float32) + b3


if __name__ == "__main__":
    key = jax.random.PRNGKey(0)
    k_x, k_p, k_b = jax.random.split(key, 3)

    # x = torch.randn(1, num_in) analogue.
    x = jax.random.normal(k_x, (1, NUM_IN), jnp.float32)
    packed = prepare_params(*init_params(k_p))

    # Module-equivalent single-sample forward: (1, 8) -> (M, 2).
    out = jax.block_until_ready(net_forward(x, packed))
    assert out.shape == (M, 2)
    ref = reference_forward(x, *packed)[0].reshape(M, 2)
    assert jnp.allclose(out, ref, atol=5e-3, rtol=5e-3)

    # Batched demo (the performance path): 256 samples in one launch,
    # grid over two 128-row tiles, weights resident in VMEM across steps.
    xb = jax.random.normal(k_b, (256, NUM_IN), jnp.float32)
    outb = jax.block_until_ready(net_forward_batch(xb, packed))
    refb = reference_forward(xb, *packed)
    assert outb.shape == (256, NUM_OUT)
    assert jnp.allclose(outb, refb, atol=5e-3, rtol=5e-3)

    print("KERNEL_OK")
</pallas_src>

<mosaic_0001>
module attributes {stable_mosaic.version = 11 : i64} {
  func.func @mlp_kernel(%arg0: i32, %arg1: memref<8x8xbf16, #tpu.memory_space<vmem>>, %arg2: memref<8x256xbf16, #tpu.memory_space<vmem>>, %arg3: memref<256x256xbf16, #tpu.memory_space<vmem>>, %arg4: memref<256x16xbf16, #tpu.memory_space<vmem>>, %arg5: memref<8x256xf32, #tpu.memory_space<vmem>>, %arg6: memref<8x16xf32, #tpu.memory_space<vmem>>) attributes {dimension_semantics = [#tpu.dimension_semantics<parallel>], iteration_bounds = array<i64: 1>, scalar_prefetch = 0 : i64, scratch_operands = 0 : i64, tpu.core_type = #tpu.core_type<tc>, window_params = [{transform_indices = @transform_0, window_bounds = array<i64: 8, 8>}, {pipeline_mode = #tpu.pipeline_mode<synchronous>, transform_indices = @transform_1, window_bounds = array<i64: 8, 256>}, {pipeline_mode = #tpu.pipeline_mode<synchronous>, transform_indices = @transform_2, window_bounds = array<i64: 256, 256>}, {pipeline_mode = #tpu.pipeline_mode<synchronous>, transform_indices = @transform_3, window_bounds = array<i64: 256, 16>}, {pipeline_mode = #tpu.pipeline_mode<synchronous>, transform_indices = @transform_4, window_bounds = array<i64: 8, 256>}, {transform_indices = @transform_5, window_bounds = array<i64: 8, 16>}]} {
    %c0 = arith.constant 0 : index
    %c0_0 = arith.constant 0 : index
    %0 = vector.load %arg1[%c0, %c0_0] : memref<8x8xbf16, #tpu.memory_space<vmem>>, vector<8x8xbf16>
    %c0_1 = arith.constant 0 : index
    %c0_2 = arith.constant 0 : index
    %1 = vector.load %arg5[%c0_1, %c0_2] : memref<8x256xf32, #tpu.memory_space<vmem>>, vector<8x256xf32>
    %2 = vector.extract_strided_slice %1 {offsets = [0, 0], sizes = [1, 256], strides = [1, 1]} : vector<8x256xf32> to vector<1x256xf32>
    %3 = vector.extract_strided_slice %1 {offsets = [1, 0], sizes = [1, 256], strides = [1, 1]} : vector<8x256xf32> to vector<1x256xf32>
    %4 = vector.extract_strided_slice %1 {offsets = [2, 0], sizes = [1, 16], strides = [1, 1]} : vector<8x256xf32> to vector<1x16xf32>
    %c0_3 = arith.constant 0 : index
    %c0_4 = arith.constant 0 : index
    %5 = vector.load %arg2[%c0_3, %c0_4] : memref<8x256xbf16, #tpu.memory_space<vmem>>, vector<8x256xbf16>
    %cst = arith.constant dense<0.000000e+00> : vector<8x256xf32>
    %6 = tpu.matmul %0, %5, %cst {dimension_numbers = #tpu.dot_dimension_numbers<[1], [0], [0], [1], [0, 0, 1, 1], [], []>} : vector<8x8xbf16>, vector<8x256xbf16>, vector<8x256xf32> -> vector<8x256xf32>
    %7 = vector.broadcast %2 : vector<1x256xf32> to vector<8x256xf32>
    %8 = arith.addf %6, %7 : vector<8x256xf32>
    %cst_5 = arith.constant 0.000000e+00 : f32
    %9 = vector.broadcast %cst_5 : f32 to vector<8x256xf32>
    %10 = arith.maximumf %8, %9 : vector<8x256xf32>
    %11 = arith.truncf %10 : vector<8x256xf32> to vector<8x256xbf16>
    %c0_6 = arith.constant 0 : index
    %c0_7 = arith.constant 0 : index
    %12 = vector.load %arg3[%c0_6, %c0_7] : memref<256x256xbf16, #tpu.memory_space<vmem>>, vector<256x256xbf16>
    %cst_8 = arith.constant dense<0.000000e+00> : vector<8x256xf32>
    %13 = tpu.matmul %11, %12, %cst_8 {dimension_numbers = #tpu.dot_dimension_numbers<[1], [0], [0], [1], [0, 0, 1, 1], [], []>} : vector<8x256xbf16>, vector<256x256xbf16>, vector<8x256xf32> -> vector<8x256xf32>
    %14 = vector.broadcast %3 : vector<1x256xf32> to vector<8x256xf32>
    %15 = arith.addf %13, %14 : vector<8x256xf32>
    %cst_9 = arith.constant 0.000000e+00 : f32
    %16 = vector.broadcast %cst_9 : f32 to vector<8x256xf32>
    %17 = arith.maximumf %15, %16 : vector<8x256xf32>
    %18 = arith.truncf %17 : vector<8x256xf32> to vector<8x256xbf16>
    %c0_10 = arith.constant 0 : index
    %c0_11 = arith.constant 0 : index
    %19 = vector.load %arg4[%c0_10, %c0_11] : memref<256x16xbf16, #tpu.memory_space<vmem>>, vector<256x16xbf16>
    %cst_12 = arith.constant dense<0.000000e+00> : vector<8x16xf32>
    %20 = tpu.matmul %18, %19, %cst_12 {dimension_numbers = #tpu.dot_dimension_numbers<[1], [0], [0], [1], [0, 0, 1, 1], [], []>} : vector<8x256xbf16>, vector<256x16xbf16>, vector<8x16xf32> -> vector<8x16xf32>
    %21 = vector.broadcast %4 : vector<1x16xf32> to vector<8x16xf32>
    %22 = arith.addf %20, %21 : vector<8x16xf32>
    %c0_13 = arith.constant 0 : index
    %c0_14 = arith.constant 0 : index
    %23 = vector.load %arg6[%c0_13, %c0_14] : memref<8x16xf32, #tpu.memory_space<vmem>>, vector<8x16xf32>
    tpu.vector_store %arg6[%c0_13, %c0_14], %22 {strides = array<i32>} : memref<8x16xf32, #tpu.memory_space<vmem>>, vector<8x16xf32>,
    return
  }
  func.func @transform_0(%arg0: i32) -> (i32, i32) {
    %c0_i32 = arith.constant 0 : i32
    %c0_i32_0 = arith.constant 0 : i32
    return %arg0, %c0_i32 : i32, i32
  }
  func.func @transform_1(%arg0: i32) -> (i32, i32) {
    %c0_i32 = arith.constant 0 : i32
    %c0_i32_0 = arith.constant 0 : i32
    %c0_i32_1 = arith.constant 0 : i32
    return %c0_i32, %c0_i32_0 : i32, i32
  }
  func.func @transform_2(%arg0: i32) -> (i32, i32) {
    %c0_i32 = arith.constant 0 : i32
    %c0_i32_0 = arith.constant 0 : i32
    %c0_i32_1 = arith.constant 0 : i32
    return %c0_i32, %c0_i32_0 : i32, i32
  }
  func.func @transform_3(%arg0: i32) -> (i32, i32) {
    %c0_i32 = arith.constant 0 : i32
    %c0_i32_0 = arith.constant 0 : i32
    %c0_i32_1 = arith.constant 0 : i32
    return %c0_i32, %c0_i32_0 : i32, i32
  }
  func.func @transform_4(%arg0: i32) -> (i32, i32) {
    %c0_i32 = arith.constant 0 : i32
    %c0_i32_0 = arith.constant 0 : i32
    %c0_i32_1 = arith.constant 0 : i32
    return %c0_i32, %c0_i32_0 : i32, i32
  }
  func.func @transform_5(%arg0: i32) -> (i32, i32) {
    %c0_i32 = arith.constant 0 : i32
    %c0_i32_0 = arith.constant 0 : i32
    return %arg0, %c0_i32 : i32, i32
  }
}

</mosaic_0001>

<llo_original>
// kernel: net_forward_batch.1
$region0: #{net_forward_batch.1}
  #allocation0 [shape = 'u32[]', space=smem, size = 0x4, offset = 0x4, fixed_abs, tag = 'smem constant byte address 0x4 - core index']
  #allocation1 [shape = 'u32[144,128]{1,0:T(1,128)}', space=vmem, size = 0x12000, scoped, tag = 'internal scratch']
  %s0 = inlined_call_operand.vmem [shape: bf16[8,8], index: 0, kind: input, shape index: {}]
  %s1 = inlined_call_operand.vmem [shape: bf16[8,256], index: 1, kind: input, shape index: {}]
  %s2 = inlined_call_operand.hbm [shape: bf16[256,256], index: 2, kind: input, shape index: {}]
  %s3 = inlined_call_operand.vmem [shape: bf16[256,16], index: 3, kind: input, shape index: {}]
  %s4 = inlined_call_operand.vmem [shape: f32[8,256], index: 4, kind: input, shape index: {}]
  %s5 = inlined_call_operand.vmem [shape: f32[8,16], index: 5, kind: output, shape index: {}]
  %s6 = sld [smem:[#allocation0]]
  $region34: #{net_forward_batch.1} parent=0
    _
  %s8 = ssub.s32 1, %s6
  %s9 = scalar_select 0, %s8, %s6
  $region1: #{net_forward_batch.1} parent=0
    #allocation2 [shape = 'u8[131072]{0}', space=vmem, size = 0x20000, scoped, tag = 'input window, operand 2, single buffered']
    #allocation3 [shape = 's32[1]{0}', space=sflag, size = 0x4, scoped, tag = 'scoped memory for net_forward_batch.1']
    %10 = vsyncpa [#allocation3], 0
    // Predicated region
    $region2: #{net_forward_batch.1} parent=1 // pred_check
      _
    $region3: #{net_forward_batch.1} parent=1 // pred_check_branch
      %12 = sbr.rel (0) target = $region5
    $region4: #{net_forward_batch.1} parent=1 // pred_region
      _
    $region5: #{net_forward_batch.1} parent=1 // pred_fallthru
      _
    // Predicated region
    $region6: #{net_forward_batch.1} parent=1 // pred_check
      _
    $region7: #{net_forward_batch.1} parent=1 // pred_check_branch
      %14 = sbr.rel (0) target = $region9
    $region8: #{net_forward_batch.1} parent=1 // pred_region
      _
    $region9: #{net_forward_batch.1} parent=1 // pred_fallthru
      _
    // Predicated region
    $region10: #{net_forward_batch.1} parent=1 // pred_check
      _
    $region11: #{net_forward_batch.1} parent=1 // pred_check_branch
      %16 = sbr.rel (0) target = $region13
    $region12: #{net_forward_batch.1} parent=1 // pred_region
      %s18 = ssub.s32 4096, 4096
      %19 = vsyncadd [#allocation3], %s18
      %s20 = sshll.u32 [#allocation2], 4
      %s21 = int_to_ptr.vmem [resolvable:$true] %s20
      %26 = dma.hbm_to_vmem [thread:$0]  %s2, 4096, %s21, [#allocation3], 128, 128, 8
    $region13: #{net_forward_batch.1} parent=1 // pred_fallthru
      _
    // Predicated region
    $region14: #{net_forward_batch.1} parent=1 // pred_check
      _
    $region15: #{net_forward_batch.1} parent=1 // pred_check_branch
      %28 = sbr.rel (0) target = $region17
    $region16: #{net_forward_batch.1} parent=1 // pred_region
      _
    $region17: #{net_forward_batch.1} parent=1 // pred_fallthru
      _
    // Predicated region
    $region18: #{net_forward_batch.1} parent=1 // pred_check
      _
    $region19: #{net_forward_batch.1} parent=1 // pred_check_branch
      %30 = sbr.rel (0) target = $region21
    $region20: #{net_forward_batch.1} parent=1 // pred_region
      _
    $region21: #{net_forward_batch.1} parent=1 // pred_fallthru
      _
    // Predicated region
    $region22: #{net_forward_batch.1} parent=1 // pred_check
      _
    $region23: #{net_forward_batch.1} parent=1 // pred_check_branch
      %32 = sbr.rel (0) target = $region25
    $region24: #{net_forward_batch.1} parent=1 // pred_region
      %33 = dma.done [#allocation3], 4096
    $region25: #{net_forward_batch.1} parent=1 // pred_fallthru
      _
    %v35 = vld [vmem:[%s0] sm:$0xf]
    %v36 = vld [vmem:[%s4] sm:$0xff]
    %v37 = vld [vmem:[%s4 + $0x8] sm:$0xff]
    %v38 = vld [vmem:[%s1] sm:$0xff]
    %v39 = vlaneseq
    %v40 = vshrl.u32 %v39, 7
    %v41 = vsub.s32 0, %v40
    %v42 = vrot.slane %v36, %v41
    %v43 = vlaneseq
    %v44 = vshrl.u32 %v43, 7
    %v45 = vsub.s32 0, %v44
    %v46 = vrot.slane %v37, %v45
    %v48 = vunpack.c.l.b16 %v38
    %v49 = vunpack.c.h.b16 %v38
    %v50 = vpack.c.b16 %v48, %v48
    %v51 = vpack.c.b16 %v49, %v49
    %vm52 = vcmask 64512
    %v54 = vsel %vm52, %v35, 0
    %vm56 = vcmask 1043456
    %v58 = vsel %vm56, %v50, 0
    %v61 = vsel %vm56, %v51, 0
    %63 = vmatprep.subr.bf16.mxu0 %v61
    %64 = vmatpush1.bf16.msra.mxu0 %v58
    %65 = vmatprep.subr.bf16.mxu0 0
    %66 = vmatpush1.bf16.msra.mxu0 0
    %67 = vmatprep.subr.bf16.mxu0 0
    %68 = vmatpush1.bf16.msra.mxu0 0
    %69 = vmatprep.subr.bf16.mxu0 0
    %70 = vmatpush1.bf16.msra.mxu0 0
    %71 = vmatprep.subr.bf16.mxu0 0
    %72 = vmatpush1.bf16.msra.mxu0 0
    %73 = vmatprep.subr.bf16.mxu0 0
    %74 = vmatpush1.bf16.msra.mxu0 0
    %75 = vmatprep.subr.bf16.mxu0 0
    %76 = vmatpush1.bf16.msra.mxu0 0
    %77 = vmatprep.subr.bf16.mxu0 0
    %78 = vmatpush1.bf16.msra.mxu0 0
    %79 = vmatprep.subr.bf16.mxu0 0
    %80 = vmatpush1.bf16.msra.mxu0 0
    %81 = vmatprep.subr.bf16.mxu0 0
    %82 = vmatpush1.bf16.msra.mxu0 0
    %83 = vmatprep.subr.bf16.mxu0 0
    %84 = vmatpush1.bf16.msra.mxu0 0
    %85 = vmatprep.subr.bf16.mxu0 0
    %86 = vmatpush1.bf16.msra.mxu0 0
    %87 = vmatprep.subr.bf16.mxu0 0
    %88 = vmatpush1.bf16.msra.mxu0 0
    %89 = vmatprep.subr.bf16.mxu0 0
    %90 = vmatpush1.bf16.msra.mxu0 0
    %91 = vmatprep.subr.bf16.mxu0 0
    %92 = vmatpush1.bf16.msra.mxu0 0
    %93 = vmatprep.subr.bf16.mxu0 0
    %94 = vmatpush1.bf16.msra.mxu0 0
    %95 = vmatprep.mubr.bf16.mxu0 0
    %96 = vmatmul.mubr.bf16.gmra.mrb[0].mxu0 %v54
    %v97 = vpop.f32.mrb[0].mxu0
    %v98 = vadd.f32 %v42, %v97
    %v99 = vpop.f32.mrb[0].mxu0
    %v100 = vadd.f32 %v46, %v99
    %v101 = vpop.f32.mrb[0].mxu0
    %v102 = vpop.f32.mrb[0].mxu0
    %103 = vdwg.mxu0
    %v104 = vmax.f32 %v98, 0.0
    %v105 = vmax.f32 %v100, 0.0
    %v106 = vpack.c.bf16 %v104, %v104
    %v107 = vpack.c.bf16 %v105, %v105
    %v108 = vld [vmem:[#allocation2] sm:$0xff]
    %v109 = vld [vmem:[#allocation2 + $0x8] sm:$0xff]
    %v110 = vld [vmem:[#allocation2 + $0x10] sm:$0xff]
    %v111 = vld [vmem:[#allocation2 + $0x18] sm:$0xff]
    %v112 = vld [vmem:[#allocation2 + $0x20] sm:$0xff]
    %v113 = vld [vmem:[#allocation2 + $0x28] sm:$0xff]
    %v114 = vld [vmem:[#allocation2 + $0x30] sm:$0xff]
    %v115 = vld [vmem:[#allocation2 + $0x38] sm:$0xff]
    %v116 = vld [vmem:[#allocation2 + $0x40] sm:$0xff]
    %v117 = vld [vmem:[#allocation2 + $0x48] sm:$0xff]
    %v118 = vld [vmem:[#allocation2 + $0x50] sm:$0xff]
    %v119 = vld [vmem:[#allocation2 + $0x58] sm:$0xff]
    %v120 = vld [vmem:[#allocation2 + $0x60] sm:$0xff]
    %v121 = vld [vmem:[#allocation2 + $0x68] sm:$0xff]
    %v122 = vld [vmem:[#allocation2 + $0x70] sm:$0xff]
    %v123 = vld [vmem:[#allocation2 + $0x78] sm:$0xff]
    %v124 = vld [vmem:[#allocation2 + $0x80] sm:$0xff]
    %v125 = vld [vmem:[#allocation2 + $0x88] sm:$0xff]
    %v126 = vld [vmem:[#allocation2 + $0x90] sm:$0xff]
    %v127 = vld [vmem:[#allocation2 + $0x98] sm:$0xff]
    %v128 = vld [vmem:[#allocation2 + $0xa0] sm:$0xff]
    %v129 = vld [vmem:[#allocation2 + $0xa8] sm:$0xff]
    %v130 = vld [vmem:[#allocation2 + $0xb0] sm:$0xff]
    %v131 = vld [vmem:[#allocation2 + $0xb8] sm:$0xff]
    %v132 = vld [vmem:[#allocation2 + $0xc0] sm:$0xff]
    %v133 = vld [vmem:[#allocation2 + $0xc8] sm:$0xff]
    %v134 = vld [vmem:[#allocation2 + $0xd0] sm:$0xff]
    %v135 = vld [vmem:[#allocation2 + $0xd8] sm:$0xff]
    %v136 = vld [vmem:[#allocation2 + $0xe0] sm:$0xff]
    %v137 = vld [vmem:[#allocation2 + $0xe8] sm:$0xff]
    %v138 = vld [vmem:[#allocation2 + $0xf0] sm:$0xff]
    %v139 = vld [vmem:[#allocation2 + $0xf8] sm:$0xff]
    %v140 = vlaneseq
    %v141 = vshrl.u32 %v140, 7
    %v142 = vsub.s32 1, %v141
    %v143 = vrot.slane %v36, %v142
    %v144 = vlaneseq
    %v145 = vshrl.u32 %v144, 7
    %v146 = vsub.s32 1, %v145
    %v147 = vrot.slane %v37, %v146
    %v180 = vunpack.c.l.b16 %v108
    %v181 = vunpack.c.h.b16 %v108
    %v182 = vunpack.c.l.b16 %v109
    %v183 = vunpack.c.h.b16 %v109
    %v184 = vunpack.c.l.b16 %v110
    %v185 = vunpack.c.h.b16 %v110
    %v186 = vunpack.c.l.b16 %v111
    %v187 = vunpack.c.h.b16 %v111
    %v188 = vunpack.c.l.b16 %v112
    %v189 = vunpack.c.h.b16 %v112
    %v190 = vunpack.c.l.b16 %v113
    %v191 = vunpack.c.h.b16 %v113
    %v192 = vunpack.c.l.b16 %v114
    %v193 = vunpack.c.h.b16 %v114
    %v194 = vunpack.c.l.b16 %v115
    %v195 = vunpack.c.h.b16 %v115
    %v196 = vunpack.c.l.b16 %v116
    %v197 = vunpack.c.h.b16 %v116
    %v198 = vunpack.c.l.b16 %v117
    %v199 = vunpack.c.h.b16 %v117
    %v200 = vunpack.c.l.b16 %v118
    %v201 = vunpack.c.h.b16 %v118
    %v202 = vunpack.c.l.b16 %v119
    %v203 = vunpack.c.h.b16 %v119
    %v204 = vunpack.c.l.b16 %v120
    %v205 = vunpack.c.h.b16 %v120
    %v206 = vunpack.c.l.b16 %v121
    %v207 = vunpack.c.h.b16 %v121
    %v208 = vunpack.c.l.b16 %v122
    %v209 = vunpack.c.h.b16 %v122
    %v210 = vunpack.c.l.b16 %v123
    %v211 = vunpack.c.h.b16 %v123
    %v212 = vunpack.c.l.b16 %v124
    %v213 = vunpack.c.h.b16 %v124
    %v214 = vunpack.c.l.b16 %v125
    %v215 = vunpack.c.h.b16 %v125
    %v216 = vunpack.c.l.b16 %v126
    %v217 = vunpack.c.h.b16 %v126
    %v218 = vunpack.c.l.b16 %v127
    %v219 = vunpack.c.h.b16 %v127
    %v220 = vunpack.c.l.b16 %v128
    %v221 = vunpack.c.h.b16 %v128
    %v222 = vunpack.c.l.b16 %v129
    %v223 = vunpack.c.h.b16 %v129
    %v224 = vunpack.c.l.b16 %v130
    %v225 = vunpack.c.h.b16 %v130
    %v226 = vunpack.c.l.b16 %v131
    %v227 = vunpack.c.h.b16 %v131
    %v228 = vunpack.c.l.b16 %v132
    %v229 = vunpack.c.h.b16 %v132
    %v230 = vunpack.c.l.b16 %v133
    %v231 = vunpack.c.h.b16 %v133
    %v232 = vunpack.c.l.b16 %v134
    %v233 = vunpack.c.h.b16 %v134
    %v234 = vunpack.c.l.b16 %v135
    %v235 = vunpack.c.h.b16 %v135
    %v236 = vunpack.c.l.b16 %v136
    %v237 = vunpack.c.h.b16 %v136
    %v238 = vunpack.c.l.b16 %v137
    %v239 = vunpack.c.h.b16 %v137
    %v240 = vunpack.c.l.b16 %v138
    %v241 = vunpack.c.h.b16 %v138
    %v242 = vunpack.c.l.b16 %v139
    %v243 = vunpack.c.h.b16 %v139
    %v244 = vpack.c.b16 %v182, %v180
    %v245 = vpack.c.b16 %v183, %v181
    %v246 = vpack.c.b16 %v186, %v184
    %v247 = vpack.c.b16 %v187, %v185
    %v248 = vpack.c.b16 %v190, %v188
    %v249 = vpack.c.b16 %v191, %v189
    %v250 = vpack.c.b16 %v194, %v192
    %v251 = vpack.c.b16 %v195, %v193
    %v252 = vpack.c.b16 %v198, %v196
    %v253 = vpack.c.b16 %v199, %v197
    %v254 = vpack.c.b16 %v202, %v200
    %v255 = vpack.c.b16 %v203, %v201
    %v256 = vpack.c.b16 %v206, %v204
    %v257 = vpack.c.b16 %v207, %v205
    %v258 = vpack.c.b16 %v210, %v208
    %v259 = vpack.c.b16 %v211, %v209
    %v260 = vpack.c.b16 %v214, %v212
    %v261 = vpack.c.b16 %v215, %v213
    %v262 = vpack.c.b16 %v218, %v216
    %v263 = vpack.c.b16 %v219, %v217
    %v264 = vpack.c.b16 %v222, %v220
    %v265 = vpack.c.b16 %v223, %v221
    %v266 = vpack.c.b16 %v226, %v224
    %v267 = vpack.c.b16 %v227, %v225
    %v268 = vpack.c.b16 %v230, %v228
    %v269 = vpack.c.b16 %v231, %v229
    %v270 = vpack.c.b16 %v234, %v232
    %v271 = vpack.c.b16 %v235, %v233
    %v272 = vpack.c.b16 %v238, %v236
    %v273 = vpack.c.b16 %v239, %v237
    %v274 = vpack.c.b16 %v242, %v240
    %v275 = vpack.c.b16 %v243, %v241
    %308 = vmatprep.subr.bf16.mxu0 %v245
    %309 = vmatpush1.bf16.msra.mxu0 %v244
    %310 = vmatprep.subr.bf16.mxu0 %v247
    %311 = vmatpush1.bf16.msra.mxu0 %v246
    %312 = vmatprep.subr.bf16.mxu0 %v249
    %313 = vmatpush1.bf16.msra.mxu0 %v248
    %314 = vmatprep.subr.bf16.mxu0 %v251
    %315 = vmatpush1.bf16.msra.mxu0 %v250
    %316 = vmatprep.subr.bf16.mxu0 %v253
    %317 = vmatpush1.bf16.msra.mxu0 %v252
    %318 = vmatprep.subr.bf16.mxu0 %v255
    %319 = vmatpush1.bf16.msra.mxu0 %v254
    %320 = vmatprep.subr.bf16.mxu0 %v257
    %321 = vmatpush1.bf16.msra.mxu0 %v256
    %322 = vmatprep.subr.bf16.mxu0 %v259
    %323 = vmatpush1.bf16.msra.mxu0 %v258
    %324 = vmatprep.subr.bf16.mxu0 %v261
    %325 = vmatpush1.bf16.msra.mxu0 %v260
    %326 = vmatprep.subr.bf16.mxu0 %v263
    %327 = vmatpush1.bf16.msra.mxu0 %v262
    %328 = vmatprep.subr.bf16.mxu0 %v265
    %329 = vmatpush1.bf16.msra.mxu0 %v264
    %330 = vmatprep.subr.bf16.mxu0 %v267
    %331 = vmatpush1.bf16.msra.mxu0 %v266
    %332 = vmatprep.subr.bf16.mxu0 %v269
    %333 = vmatpush1.bf16.msra.mxu0 %v268
    %334 = vmatprep.subr.bf16.mxu0 %v271
    %335 = vmatpush1.bf16.msra.mxu0 %v270
    %336 = vmatprep.subr.bf16.mxu0 %v273
    %337 = vmatpush1.bf16.msra.mxu0 %v272
    %338 = vmatprep.subr.bf16.mxu0 %v275
    %339 = vmatpush1.bf16.msra.mxu0 %v274
    %340 = vmatprep.mubr.bf16.mxu0 %v107
    %341 = vmatmul.mubr.bf16.gmra.mrb[0].mxu0 %v106
    %v342 = vpop.f32.mrb[0].mxu0
    %v343 = vadd.f32 %v143, %v342
    %v344 = vpop.f32.mrb[0].mxu0
    %v345 = vadd.f32 %v147, %v344
    %v346 = vpop.f32.mrb[0].mxu0
    %v347 = vpop.f32.mrb[0].mxu0
    %348 = vdwg.mxu0
    %v349 = vmax.f32 %v343, 0.0
    %v350 = vmax.f32 %v345, 0.0
    %v351 = vpack.c.bf16 %v349, %v349
    %v352 = vpack.c.bf16 %v350, %v350
    %v353 = vld [vmem:[%s3] sm:$0xf]
    %v354 = vld [vmem:[%s3 + $0x4] sm:$0xf]
    %v355 = vld [vmem:[%s3 + $0x8] sm:$0xf]
    %v356 = vld [vmem:[%s3 + $0xc] sm:$0xf]
    %v357 = vld [vmem:[%s3 + $0x10] sm:$0xf]
    %v358 = vld [vmem:[%s3 + $0x14] sm:$0xf]
    %v359 = vld [vmem:[%s3 + $0x18] sm:$0xf]
    %v360 = vld [vmem:[%s3 + $0x1c] sm:$0xf]
    %v361 = vld [vmem:[%s3 + $0x20] sm:$0xf]
    %v362 = vld [vmem:[%s3 + $0x24] sm:$0xf]
    %v363 = vld [vmem:[%s3 + $0x28] sm:$0xf]
    %v364 = vld [vmem:[%s3 + $0x2c] sm:$0xf]
    %v365 = vld [vmem:[%s3 + $0x30] sm:$0xf]
    %v366 = vld [vmem:[%s3 + $0x34] sm:$0xf]
    %v367 = vld [vmem:[%s3 + $0x38] sm:$0xf]
    %v368 = vld [vmem:[%s3 + $0x3c] sm:$0xf]
    %v369 = vld [vmem:[%s3 + $0x40] sm:$0xf]
    %v370 = vld [vmem:[%s3 + $0x44] sm:$0xf]
    %v371 = vld [vmem:[%s3 + $0x48] sm:$0xf]
    %v372 = vld [vmem:[%s3 + $0x4c] sm:$0xf]
    %v373 = vld [vmem:[%s3 + $0x50] sm:$0xf]
    %v374 = vld [vmem:[%s3 + $0x54] sm:$0xf]
    %v375 = vld [vmem:[%s3 + $0x58] sm:$0xf]
    %v376 = vld [vmem:[%s3 + $0x5c] sm:$0xf]
    %v377 = vld [vmem:[%s3 + $0x60] sm:$0xf]
    %v378 = vld [vmem:[%s3 + $0x64] sm:$0xf]
    %v379 = vld [vmem:[%s3 + $0x68] sm:$0xf]
    %v380 = vld [vmem:[%s3 + $0x6c] sm:$0xf]
    %v381 = vld [vmem:[%s3 + $0x70] sm:$0xf]
    %v382 = vld [vmem:[%s3 + $0x74] sm:$0xf]
    %v383 = vld [vmem:[%s3 + $0x78] sm:$0xf]
    %v384 = vld [vmem:[%s3 + $0x7c] sm:$0xf]
    %v385 = vlaneseq
    %v386 = vshrl.u32 %v385, 7
    %v387 = vsub.s32 2, %v386
    %v388 = vrot.slane %v36, %v387
    %v421 = vunpack.c.l.b16 %v353
    %v422 = vunpack.c.l.b16 %v354
    %v423 = vunpack.c.l.b16 %v355
    %v424 = vunpack.c.l.b16 %v356
    %v425 = vunpack.c.l.b16 %v357
    %v426 = vunpack.c.l.b16 %v358
    %v427 = vunpack.c.l.b16 %v359
    %v428 = vunpack.c.l.b16 %v360
    %v429 = vunpack.c.l.b16 %v361
    %v430 = vunpack.c.l.b16 %v362
    %v431 = vunpack.c.l.b16 %v363
    %v432 = vunpack.c.l.b16 %v364
    %v433 = vunpack.c.l.b16 %v365
    %v434 = vunpack.c.l.b16 %v366
    %v435 = vunpack.c.l.b16 %v367
    %v436 = vunpack.c.l.b16 %v368
    %v437 = vunpack.c.l.b16 %v369
    %v438 = vunpack.c.l.b16 %v370
    %v439 = vunpack.c.l.b16 %v371
    %v440 = vunpack.c.l.b16 %v372
    %v441 = vunpack.c.l.b16 %v373
    %v442 = vunpack.c.l.b16 %v374
    %v443 = vunpack.c.l.b16 %v375
    %v444 = vunpack.c.l.b16 %v376
    %v445 = vunpack.c.l.b16 %v377
    %v446 = vunpack.c.l.b16 %v378
    %v447 = vunpack.c.l.b16 %v379
    %v448 = vunpack.c.l.b16 %v380
    %v449 = vunpack.c.l.b16 %v381
    %v450 = vunpack.c.l.b16 %v382
    %v451 = vunpack.c.l.b16 %v383
    %v452 = vunpack.c.l.b16 %v384
    %v453 = vpack.c.b16 %v422, %v421
    %v454 = vpack.c.b16 %v424, %v423
    %v455 = vpack.c.b16 %v426, %v425
    %v456 = vpack.c.b16 %v428, %v427
    %v457 = vpack.c.b16 %v430, %v429
    %v458 = vpack.c.b16 %v432, %v431
    %v459 = vpack.c.b16 %v434, %v433
    %v460 = vpack.c.b16 %v436, %v435
    %v461 = vpack.c.b16 %v438, %v437
    %v462 = vpack.c.b16 %v440, %v439
    %v463 = vpack.c.b16 %v442, %v441
    %v464 = vpack.c.b16 %v444, %v443
    %v465 = vpack.c.b16 %v446, %v445
    %v466 = vpack.c.b16 %v448, %v447
    %v467 = vpack.c.b16 %v450, %v449
    %v468 = vpack.c.b16 %v452, %v451
    %485 = vmatprep.subr.bf16.mxu0 0
    %486 = vmatpush1.bf16.msra.mxu0 %v453
    %487 = vmatprep.subr.bf16.mxu0 0
    %488 = vmatpush1.bf16.msra.mxu0 %v454
    %489 = vmatprep.subr.bf16.mxu0 0
    %490 = vmatpush1.bf16.msra.mxu0 %v455
    %491 = vmatprep.subr.bf16.mxu0 0
    %492 = vmatpush1.bf16.msra.mxu0 %v456
    %493 = vmatprep.subr.bf16.mxu0 0
    %494 = vmatpush1.bf16.msra.mxu0 %v457
    %495 = vmatprep.subr.bf16.mxu0 0
    %496 = vmatpush1.bf16.msra.mxu0 %v458
    %497 = vmatprep.subr.bf16.mxu0 0
    %498 = vmatpush1.bf16.msra.mxu0 %v459
    %499 = vmatprep.subr.bf16.mxu0 0
    %500 = vmatpush1.bf16.msra.mxu0 %v460
    %501 = vmatprep.subr.bf16.mxu0 0
    %502 = vmatpush1.bf16.msra.mxu0 %v461
    %503 = vmatprep.subr.bf16.mxu0 0
    %504 = vmatpush1.bf16.msra.mxu0 %v462
    %505 = vmatprep.subr.bf16.mxu0 0
    %506 = vmatpush1.bf16.msra.mxu0 %v463
    %507 = vmatprep.subr.bf16.mxu0 0
    %508 = vmatpush1.bf16.msra.mxu0 %v464
    %509 = vmatprep.subr.bf16.mxu0 0
    %510 = vmatpush1.bf16.msra.mxu0 %v465
    %511 = vmatprep.subr.bf16.mxu0 0
    %512 = vmatpush1.bf16.msra.mxu0 %v466
    %513 = vmatprep.subr.bf16.mxu0 0
    %514 = vmatpush1.bf16.msra.mxu0 %v467
    %515 = vmatprep.subr.bf16.mxu0 0
    %516 = vmatpush1.bf16.msra.mxu0 %v468
    %517 = vmatprep.mubr.bf16.mxu0 %v352
    %518 = vmatmul.mubr.bf16.gmra.mrb[0].mxu0 %v351
    %v519 = vpop.f32.mrb[0].mxu0
    %v520 = vadd.f32 %v388, %v519
    %v521 = vpop.f32.mrb[0].mxu0
    %v522 = vpop.f32.mrb[0].mxu0
    %v523 = vpop.f32.mrb[0].mxu0
    %524 = vdwg.mxu0
    %vm525 = vcmask 130048
    %526 = vst.msk [vmem:[%s5] sm:$0xff] %vm525, %v520
    // Predicated region
    $region26: #{net_forward_batch.1} parent=1 // pred_check
      _
    $region27: #{net_forward_batch.1} parent=1 // pred_check_branch
      %528 = sbr.rel (0) target = $region29
    $region28: #{net_forward_batch.1} parent=1 // pred_region
      _
    $region29: #{net_forward_batch.1} parent=1 // pred_fallthru
      _
    // Predicated region
    $region30: #{net_forward_batch.1} parent=1 // pred_check
      _
    $region31: #{net_forward_batch.1} parent=1 // pred_check_branch
      %530 = sbr.rel (0) target = $region33
    $region32: #{net_forward_batch.1} parent=1 // pred_region
      _
    $region33: #{net_forward_batch.1} parent=1 // pred_fallthru
      _
    %531 = vsyncpa [#allocation3], 1

</llo_original>
